<compile_context>
chip_gen: v7x
topology: tpu7x:2x2x1
jax: 0.10.0
libtpu: 0.0.40
codegen_flags: <defaults>
</compile_context>

<pallas_src>
import jax
import jax.numpy as jnp
from jax.experimental import pallas as pl
from jax.experimental.pallas import tpu as pltpu


def _ceil_to(x, m):
    return -(-x // m) * m


# ----------------------------------------------------------------------------
# Wrapper-side hardware queries (concrete Python values, safe fallbacks).
# ----------------------------------------------------------------------------
def _tpu_generation():
    try:
        kind = jax.devices()[0].device_kind.lower()
    except Exception:
        return 0
    if "v7" in kind or "7x" in kind:
        return 7
    for g in (6, 5, 4, 3, 2):
        if f"v{g}" in kind:
            return g
    return 0


def _vmem_capacity_bytes(gen):
    try:
        return int(pltpu.get_tpu_info().vmem_capacity_bytes)
    except Exception:
        # Conservative fallbacks: v7x has 64 MiB per TensorCore, older 128 MiB.
        return (64 << 20) if gen in (0, 7) else (128 << 20)


# ----------------------------------------------------------------------------
# VMEM footprint estimates (sublane padding + default double-buffering).
# ----------------------------------------------------------------------------
def _tile_vmem_bytes(tile_hw, F_g, F_l, F_int, h_chunk, io_itemsize, f32_tail):
    sub = 8 if io_itemsize >= 4 else 16                      # f32: 8 rows, bf16: 16
    # double-buffered streaming tiles: g in, x in, out
    stream = 2 * (_ceil_to(F_g, sub) + 2 * _ceil_to(F_l, sub)) * tile_hw * io_itemsize
    # f32 intermediates: one h chunk + p/psi rows (+ f32 tail temps on v5e/f32)
    rows = _ceil_to(min(h_chunk, F_int), 8) + 16
    if f32_tail:
        rows += 2 * _ceil_to(F_l, 8)
    return stream + rows * tile_hw * 4


def _weight_vmem_bytes(F_g, F_l, F_int, w_itemsize):
    sub = 8 if w_itemsize >= 4 else 16
    wgx = _ceil_to(F_int, sub) * (_ceil_to(F_g, 128) + _ceil_to(F_l, 128)) * w_itemsize
    wp = sub * _ceil_to(F_int, 128) * w_itemsize
    b1 = _ceil_to(F_int, 8) * 128 * 4
    return 2 * (wgx + wp + b1)      # resident blocks are still double-buffered


def _pick_tile_hw(hw_pad, n_batch, lane_cap, fits):
    """Largest multiple of 128 dividing hw_pad that fits the VMEM budget,
    capped at lane_cap and (when N == 1) at hw_pad // 2 so the grid always has
    >= 2 parallel steps (v7x megacore + DMA/compute overlap)."""
    cap = min(lane_cap, hw_pad)
    if n_batch == 1 and hw_pad >= 256:
        cap = min(cap, hw_pad // 2)
    best, t = 128, 128
    while t <= cap:
        if hw_pad % t == 0 and fits(t):
            best = t
        t += 128
    return best


# ----------------------------------------------------------------------------
# Kernel factory: per (batch, pixel-tile) attention-gate hot path.
#   h   = relu(Wg @ g + Wx @ x + b1)     (b1 = bg + bx, BN folded)
#   psi = sigmoid(Wp @ h + bp)
#   out = x * psi
# F_int is processed in <= h_chunk row chunks so the (F_int, T) h intermediate
# never hits VMEM in full.
# ----------------------------------------------------------------------------
def _make_attn_gate_kernel(F_int, h_chunk, bf16_tail):
    def kernel(g_ref, x_ref, wg_ref, wx_ref, b1_ref, wp_ref, bp_ref, out_ref):
        g = g_ref[...]                       # (F_g, T) in I/O dtype (f32/bf16)
        x = x_ref[...]                       # (F_l, T)
        dot_dtype = wg_ref.dtype             # bf16 weights <=> bf16 I/O

        T = out_ref.shape[-1]
        p = jnp.zeros((1, T), jnp.float32)
        # Static chunk loop (F_int, h_chunk compile-time constants).
        for s in range(0, F_int, h_chunk):
            e = min(s + h_chunk, F_int)
            h = jnp.dot(wg_ref[s:e, :], g, preferred_element_type=jnp.float32)
            h = h + jnp.dot(wx_ref[s:e, :], x, preferred_element_type=jnp.float32)
            h = jnp.maximum(h + b1_ref[s:e, :], 0.0)          # f32 (chunk, T)
            p = p + jnp.dot(wp_ref[:, s:e], h.astype(dot_dtype),
                            preferred_element_type=jnp.float32)
        psi = jax.nn.sigmoid(p + bp_ref[0])                   # (1, T) f32 (EUP)

        if bf16_tail:
            # v6e/v7x: bf16 VALU tail -- no (F_l, T) f32 temp.
            out_ref[...] = (x * psi.astype(x.dtype)).astype(out_ref.dtype)
        else:
            # v5e / f32 I/O: f32 element-wise tail.
            out_ref[...] = (x.astype(jnp.float32) * psi).astype(out_ref.dtype)
    return kernel


_H_CHUNK = 128   # rows of F_int per inner chunk (MXU-aligned)


def attention_block_pallas(g_nchw, x_nchw, kernel_params):
    """Attention-gate forward.  g_nchw: (N, F_g, H, W), x_nchw: (N, F_l, H, W)."""
    wg, wx, b1, wp, bp = kernel_params
    N, F_g, H, W = g_nchw.shape
    _, F_l, _, _ = x_nchw.shape
    F_int = wg.shape[0]
    assert g_nchw.dtype == x_nchw.dtype

    io_dtype = x_nchw.dtype
    io_itemsize = jnp.dtype(io_dtype).itemsize
    gen = _tpu_generation()

    # bf16 I/O -> bf16 MXU operands (f32 accumulation); f32 I/O stays strict f32.
    use_bf16 = io_dtype == jnp.bfloat16
    w_dtype = jnp.bfloat16 if use_bf16 else jnp.float32
    wg_k = wg.astype(w_dtype)
    wx_k = wx.astype(w_dtype)
    wp_k = wp.astype(w_dtype)
    b1_k = b1.astype(jnp.float32)
    bp_k = bp.astype(jnp.float32).reshape(-1)[:1]        # (1,) scalar via SMEM
    bf16_tail = use_bf16 and gen >= 6                    # v5e has no bf16 VALU

    # Free reshape NCHW -> (N, C, H*W); pad H*W to a multiple of 128 so stores
    # are full-width lane-dense `vst` (padded pixels sliced off below).
    HW = H * W
    HW_pad = _ceil_to(HW, 128)
    g_m = g_nchw.reshape(N, F_g, HW)
    x_m = x_nchw.reshape(N, F_l, HW)
    if HW_pad != HW:
        pad = ((0, 0), (0, 0), (0, HW_pad - HW))
        g_m = jnp.pad(g_m, pad)
        x_m = jnp.pad(x_m, pad)

    # Generation-aware tile sizing against an explicit VMEM budget.
    vmem_cap = _vmem_capacity_bytes(gen)
    lane_cap = 4096 if gen == 6 else 2048      # v6e has the most VMEM headroom
    w_bytes = _weight_vmem_bytes(F_g, F_l, F_int, jnp.dtype(w_dtype).itemsize)
    budget = max(min(vmem_cap // 2, 32 << 20) - w_bytes, 2 << 20)
    fits = lambda t: _tile_vmem_bytes(t, F_g, F_l, F_int, _H_CHUNK,
                                      io_itemsize, not bf16_tail) <= budget
    tile_hw = _pick_tile_hw(HW_pad, N, lane_cap, fits)

    tile_bytes = _tile_vmem_bytes(tile_hw, F_g, F_l, F_int, _H_CHUNK,
                                  io_itemsize, not bf16_tail)
    vmem_limit = int(min(vmem_cap * 7 // 8,
                         max(32 << 20, tile_bytes + w_bytes + (8 << 20))))

    grid = (N, HW_pad // tile_hw)
    data_map = lambda n, j: (n, 0, j)
    resident = lambda n, j: (0, 0)   # weights/biases stay resident in VMEM
    # NOTE: the resident blocks could be single-buffered (pipeline_mode=
    # pl.Buffered(1)); we instead charge their default double-buffer to the
    # VMEM budget above and keep the most conservative lowering path.
    # TODO(synk): optional [Wg|Wx] fusion (one K=F_g+F_l dot) if ever MXU-bound.

    kernel = _make_attn_gate_kernel(F_int, _H_CHUNK, bf16_tail)

    out_m = pl.pallas_call(
        kernel,
        out_shape=jax.ShapeDtypeStruct((N, F_l, HW_pad), io_dtype),
        grid_spec=pltpu.PrefetchScalarGridSpec(
            num_scalar_prefetch=0,
            grid=grid,
            in_specs=[
                pl.BlockSpec((None, F_g, tile_hw), data_map),    # g tile
                pl.BlockSpec((None, F_l, tile_hw), data_map),    # x tile
                pl.BlockSpec((F_int, F_g), resident),            # Wg (BN folded)
                pl.BlockSpec((F_int, F_l), resident),            # Wx (BN folded)
                pl.BlockSpec((F_int, 1), resident),              # b1 = bg + bx
                pl.BlockSpec((1, F_int), resident),              # Wpsi (BN folded)
                pl.BlockSpec(memory_space=pltpu.MemorySpace.SMEM),  # bpsi scalar
            ],
            out_specs=pl.BlockSpec((None, F_l, tile_hw), data_map),
        ),
        compiler_params=pltpu.CompilerParams(
            dimension_semantics=("parallel", "parallel"),
            vmem_limit_bytes=vmem_limit),
    )(g_m, x_m, wg_k, wx_k, b1_k, wp_k, bp_k)

    if HW_pad != HW:
        out_m = out_m[:, :, :HW]
    return out_m.reshape(N, F_l, H, W)


# ----------------------------------------------------------------------------
# Parameter construction: deterministic 1x1-conv weights + folded BatchNorm.
# Conv weights are kept in PyTorch (C_out, C_in) layout (== weight[:, :, 0, 0]).
# ----------------------------------------------------------------------------
def _fold_bn_into_conv(w_oi, b_o, gamma, beta, mean, var, eps=1e-5):
    scale = gamma / jnp.sqrt(var + eps)
    return w_oi * scale[:, None], (b_o - mean) * scale + beta


def make_params(key, F_g, F_l, F_int):
    ks = jax.random.split(key, 6)
    wg = jax.random.normal(ks[0], (F_int, F_g), jnp.float32) * 0.1
    bg = jax.random.normal(ks[1], (F_int,), jnp.float32) * 0.1
    wx = jax.random.normal(ks[2], (F_int, F_l), jnp.float32) * 0.1
    bx = jax.random.normal(ks[3], (F_int,), jnp.float32) * 0.1
    wp = jax.random.normal(ks[4], (1, F_int), jnp.float32) * 0.1
    bp = jax.random.normal(ks[5], (1,), jnp.float32) * 0.1

    ones = lambda n: jnp.ones((n,), jnp.float32)
    zeros = lambda n: jnp.zeros((n,), jnp.float32)
    wg_f, bg_f = _fold_bn_into_conv(wg, bg, ones(F_int), zeros(F_int),
                                    zeros(F_int), ones(F_int))
    wx_f, bx_f = _fold_bn_into_conv(wx, bx, ones(F_int), zeros(F_int),
                                    zeros(F_int), ones(F_int))
    wp_f, bp_f = _fold_bn_into_conv(wp, bp, ones(1), zeros(1), zeros(1), ones(1))

    b1 = (bg_f + bx_f)[:, None]        # (F_int, 1) fused bias of both branches
    return (wg_f, wx_f, b1, wp_f, bp_f)  # bp_f: (1,)


# ----------------------------------------------------------------------------
# Pure-JAX reference (same BN folding).
# ----------------------------------------------------------------------------
def attention_block_ref(g_nchw, x_nchw, kernel_params):
    wg, wx, b1, wp, bp = kernel_params
    N, F_g, H, W = g_nchw.shape
    F_l = x_nchw.shape[1]
    hi = jax.lax.Precision.HIGHEST
    g_m = g_nchw.reshape(N, F_g, H * W).astype(jnp.float32)
    x_m = x_nchw.reshape(N, F_l, H * W).astype(jnp.float32)
    h = (jnp.einsum('oc,ncp->nop', wg, g_m, precision=hi)
         + jnp.einsum('oc,ncp->nop', wx, x_m, precision=hi))
    h = jnp.maximum(h + b1[None], 0.0)
    psi = jax.nn.sigmoid(jnp.einsum('oc,ncp->nop', wp, h, precision=hi)
                         + bp.reshape(1, 1, 1))
    out = x_m * psi
    return out.reshape(N, F_l, H, W)


if __name__ == "__main__":
    key = jax.random.PRNGKey(0)

    # --- Config 1: toy gate, single F_int chunk, HW already 128-aligned. ----
    F_g, F_l, F_int = 4, 4, 32
    N, H, W = 2, 16, 16
    kg, kx, kp = jax.random.split(jax.random.fold_in(key, 1), 3)
    g = jax.random.normal(kg, (N, F_g, H, W), jnp.float32)
    x = jax.random.normal(kx, (N, F_l, H, W), jnp.float32)
    params = make_params(kp, F_g, F_l, F_int)

    out = jax.block_until_ready(attention_block_pallas(g, x, params))
    ref = attention_block_ref(g, x, params)
    assert out.shape == (N, F_l, H, W) and out.dtype == jnp.float32
    assert jnp.allclose(out, ref, atol=1e-4, rtol=1e-4), "cfg1 f32 mismatch"

    g16, x16 = g.astype(jnp.bfloat16), x.astype(jnp.bfloat16)
    out16 = jax.block_until_ready(attention_block_pallas(g16, x16, params))
    ref16 = attention_block_ref(g16, x16, params)
    assert out16.dtype == jnp.bfloat16
    assert jnp.allclose(out16.astype(jnp.float32), ref16, atol=5e-2, rtol=5e-2), \
        "cfg1 bf16 mismatch"

    # --- Config 2: exercises the chunked-F_int path (192 > 128), ragged H*W
    # padding (20*20=400 -> 512) and the N == 1 tile split (>=2 grid steps). --
    F_g2, F_l2, F_int2 = 6, 10, 192
    N2, H2, W2 = 1, 20, 20
    kg2, kx2, kp2 = jax.random.split(jax.random.fold_in(key, 2), 3)
    g2 = jax.random.normal(kg2, (N2, F_g2, H2, W2), jnp.float32)
    x2 = jax.random.normal(kx2, (N2, F_l2, H2, W2), jnp.float32)
    params2 = make_params(kp2, F_g2, F_l2, F_int2)

    out2 = jax.block_until_ready(attention_block_pallas(g2, x2, params2))
    ref2 = attention_block_ref(g2, x2, params2)
    assert out2.shape == (N2, F_l2, H2, W2)
    assert jnp.allclose(out2, ref2, atol=1e-4, rtol=1e-4), "cfg2 f32 mismatch"

    g2b, x2b = g2.astype(jnp.bfloat16), x2.astype(jnp.bfloat16)
    out2b = jax.block_until_ready(attention_block_pallas(g2b, x2b, params2))
    ref2b = attention_block_ref(g2b, x2b, params2)
    assert jnp.allclose(out2b.astype(jnp.float32), ref2b, atol=5e-2, rtol=5e-2), \
        "cfg2 bf16 mismatch"

    print("KERNEL_OK")
</pallas_src>

<mosaic_0001>
module attributes {stable_mosaic.version = 11 : i64} {
  func.func @kernel(%arg0: i32, %arg1: i32, %arg2: memref<1x4x256xf32, #tpu.memory_space<vmem>>, %arg3: memref<1x4x256xf32, #tpu.memory_space<vmem>>, %arg4: memref<32x4xf32, #tpu.memory_space<vmem>>, %arg5: memref<32x4xf32, #tpu.memory_space<vmem>>, %arg6: memref<32x1xf32, #tpu.memory_space<vmem>>, %arg7: memref<1x32xf32, #tpu.memory_space<vmem>>, %arg8: memref<1xf32, #tpu.memory_space<smem>>, %arg9: memref<1x4x256xf32, #tpu.memory_space<vmem>>) attributes {dimension_semantics = [#tpu.dimension_semantics<parallel>, #tpu.dimension_semantics<parallel>], iteration_bounds = array<i64: 2, 1>, scalar_prefetch = 0 : i64, scratch_operands = 0 : i64, tpu.core_type = #tpu.core_type<tc>, window_params = [{transform_indices = @transform_0, window_bounds = array<i64: 1, 4, 256>}, {transform_indices = @transform_1, window_bounds = array<i64: 1, 4, 256>}, {pipeline_mode = #tpu.pipeline_mode<synchronous>, transform_indices = @transform_2, window_bounds = array<i64: 32, 4>}, {pipeline_mode = #tpu.pipeline_mode<synchronous>, transform_indices = @transform_3, window_bounds = array<i64: 32, 4>}, {pipeline_mode = #tpu.pipeline_mode<synchronous>, transform_indices = @transform_4, window_bounds = array<i64: 32, 1>}, {pipeline_mode = #tpu.pipeline_mode<synchronous>, transform_indices = @transform_5, window_bounds = array<i64: 1, 32>}, {transform_indices = @transform_6, window_bounds = array<i64: 1>}, {transform_indices = @transform_7, window_bounds = array<i64: 1, 4, 256>}]} {
    %c0 = arith.constant 0 : index
    %c0_0 = arith.constant 0 : index
    %c0_1 = arith.constant 0 : index
    %0 = vector.load %arg2[%c0, %c0_0, %c0_1] : memref<1x4x256xf32, #tpu.memory_space<vmem>>, vector<1x4x256xf32>
    %1 = vector.shape_cast %0 : vector<1x4x256xf32> to vector<4x256xf32>
    %c0_2 = arith.constant 0 : index
    %c0_3 = arith.constant 0 : index
    %c0_4 = arith.constant 0 : index
    %2 = vector.load %arg3[%c0_2, %c0_3, %c0_4] : memref<1x4x256xf32, #tpu.memory_space<vmem>>, vector<1x4x256xf32>
    %3 = vector.shape_cast %2 : vector<1x4x256xf32> to vector<4x256xf32>
    %cst = arith.constant 0.000000e+00 : f32
    %4 = vector.broadcast %cst : f32 to vector<1x256xf32>
    %c0_5 = arith.constant 0 : index
    %c0_6 = arith.constant 0 : index
    %5 = vector.load %arg4[%c0_5, %c0_6] : memref<32x4xf32, #tpu.memory_space<vmem>>, vector<32x4xf32>
    %cst_7 = arith.constant dense<0.000000e+00> : vector<32x256xf32>
    %6 = tpu.matmul %5, %1, %cst_7 {dimension_numbers = #tpu.dot_dimension_numbers<[1], [0], [0], [1], [0, 0, 1, 1], [], []>} : vector<32x4xf32>, vector<4x256xf32>, vector<32x256xf32> -> vector<32x256xf32>
    %c0_8 = arith.constant 0 : index
    %c0_9 = arith.constant 0 : index
    %7 = vector.load %arg5[%c0_8, %c0_9] : memref<32x4xf32, #tpu.memory_space<vmem>>, vector<32x4xf32>
    %cst_10 = arith.constant dense<0.000000e+00> : vector<32x256xf32>
    %8 = tpu.matmul %7, %3, %cst_10 {dimension_numbers = #tpu.dot_dimension_numbers<[1], [0], [0], [1], [0, 0, 1, 1], [], []>} : vector<32x4xf32>, vector<4x256xf32>, vector<32x256xf32> -> vector<32x256xf32>
    %9 = arith.addf %6, %8 : vector<32x256xf32>
    %c0_11 = arith.constant 0 : index
    %c0_12 = arith.constant 0 : index
    %10 = vector.load %arg6[%c0_11, %c0_12] : memref<32x1xf32, #tpu.memory_space<vmem>>, vector<32x1xf32>
    %11 = vector.broadcast %10 : vector<32x1xf32> to vector<32x256xf32>
    %12 = arith.addf %9, %11 : vector<32x256xf32>
    %cst_13 = arith.constant 0.000000e+00 : f32
    %13 = vector.broadcast %cst_13 : f32 to vector<32x256xf32>
    %14 = arith.maximumf %12, %13 : vector<32x256xf32>
    %c0_14 = arith.constant 0 : index
    %c0_15 = arith.constant 0 : index
    %15 = vector.load %arg7[%c0_14, %c0_15] : memref<1x32xf32, #tpu.memory_space<vmem>>, vector<1x32xf32>
    %cst_16 = arith.constant dense<0.000000e+00> : vector<1x256xf32>
    %16 = tpu.matmul %15, %14, %cst_16 {dimension_numbers = #tpu.dot_dimension_numbers<[1], [0], [0], [1], [0, 0, 1, 1], [], []>} : vector<1x32xf32>, vector<32x256xf32>, vector<1x256xf32> -> vector<1x256xf32>
    %17 = arith.addf %4, %16 : vector<1x256xf32>
    %c0_17 = arith.constant 0 : index
    %18 = memref.load %arg8[%c0_17] : memref<1xf32, #tpu.memory_space<smem>>
    %19 = vector.broadcast %18 : f32 to vector<1x256xf32>
    %20 = arith.addf %17, %19 : vector<1x256xf32>
    %21 = arith.negf %20 : vector<1x256xf32>
    %22 = math.exp %21 : vector<1x256xf32>
    %cst_18 = arith.constant 1.000000e+00 : f32
    %23 = vector.broadcast %cst_18 : f32 to vector<1x256xf32>
    %24 = arith.addf %23, %22 : vector<1x256xf32>
    %25 = arith.divf %23, %24 : vector<1x256xf32>
    %26 = vector.broadcast %25 : vector<1x256xf32> to vector<4x256xf32>
    %27 = arith.mulf %3, %26 : vector<4x256xf32>
    %c0_19 = arith.constant 0 : index
    %c0_20 = arith.constant 0 : index
    %c0_21 = arith.constant 0 : index
    %28 = vector.load %arg9[%c0_19, %c0_20, %c0_21] : memref<1x4x256xf32, #tpu.memory_space<vmem>>, vector<1x4x256xf32>
    %29 = vector.shape_cast %28 : vector<1x4x256xf32> to vector<4x256xf32>
    %30 = vector.shape_cast %27 : vector<4x256xf32> to vector<1x4x256xf32>
    tpu.vector_store %arg9[%c0_19, %c0_20, %c0_21], %30 {strides = array<i32>} : memref<1x4x256xf32, #tpu.memory_space<vmem>>, vector<1x4x256xf32>,
    return
  }
  func.func @transform_0(%arg0: i32, %arg1: i32) -> (i32, i32, i32) {
    %c0_i32 = arith.constant 0 : i32
    %c0_i32_0 = arith.constant 0 : i32
    return %arg0, %c0_i32, %arg1 : i32, i32, i32
  }
  func.func @transform_1(%arg0: i32, %arg1: i32) -> (i32, i32, i32) {
    %c0_i32 = arith.constant 0 : i32
    %c0_i32_0 = arith.constant 0 : i32
    return %arg0, %c0_i32, %arg1 : i32, i32, i32
  }
  func.func @transform_2(%arg0: i32, %arg1: i32) -> (i32, i32) {
    %c0_i32 = arith.constant 0 : i32
    %c0_i32_0 = arith.constant 0 : i32
    %c0_i32_1 = arith.constant 0 : i32
    return %c0_i32, %c0_i32_0 : i32, i32
  }
  func.func @transform_3(%arg0: i32, %arg1: i32) -> (i32, i32) {
    %c0_i32 = arith.constant 0 : i32
    %c0_i32_0 = arith.constant 0 : i32
    %c0_i32_1 = arith.constant 0 : i32
    return %c0_i32, %c0_i32_0 : i32, i32
  }
  func.func @transform_4(%arg0: i32, %arg1: i32) -> (i32, i32) {
    %c0_i32 = arith.constant 0 : i32
    %c0_i32_0 = arith.constant 0 : i32
    %c0_i32_1 = arith.constant 0 : i32
    return %c0_i32, %c0_i32_0 : i32, i32
  }
  func.func @transform_5(%arg0: i32, %arg1: i32) -> (i32, i32) {
    %c0_i32 = arith.constant 0 : i32
    %c0_i32_0 = arith.constant 0 : i32
    %c0_i32_1 = arith.constant 0 : i32
    return %c0_i32, %c0_i32_0 : i32, i32
  }
  func.func @transform_6(%arg0: i32, %arg1: i32) -> i32 {
    %c0_i32 = arith.constant 0 : i32
    %c0_i32_0 = arith.constant 0 : i32
    return %c0_i32 : i32
  }
  func.func @transform_7(%arg0: i32, %arg1: i32) -> (i32, i32, i32) {
    %c0_i32 = arith.constant 0 : i32
    %c0_i32_0 = arith.constant 0 : i32
    return %arg0, %c0_i32, %arg1 : i32, i32, i32
  }
}

</mosaic_0001>

<llo_original>
// kernel: tpu_custom_call.1
$region0: #{tpu_custom_call.1}
  #allocation0 [shape = 'u32[]', space=smem, size = 0x4, offset = 0x4, fixed_abs, tag = 'smem constant byte address 0x4 - core index']
  #allocation1 [shape = 'u32[144,128]{1,0:T(1,128)}', space=vmem, size = 0x12000, scoped, tag = 'internal scratch']
  #allocation2 [shape = 'f32[1]{0:T(128)S(6)}', space=smem, size = 0x200, scoped, tag = 'scoped memory for tpu_custom_call.1']
  %s0 = inlined_call_operand.vmem [shape: f32[2,4,256], index: 0, kind: input, shape index: {}]
  %s1 = inlined_call_operand.vmem [shape: f32[2,4,256], index: 1, kind: input, shape index: {}]
  %s2 = inlined_call_operand.vmem [shape: f32[32,4], index: 2, kind: input, shape index: {}]
  %s3 = inlined_call_operand.vmem [shape: f32[32,4], index: 3, kind: input, shape index: {}]
  %s4 = inlined_call_operand.vmem [shape: f32[32,1], index: 4, kind: input, shape index: {}]
  %s5 = inlined_call_operand.vmem [shape: f32[1,32], index: 5, kind: input, shape index: {}]
  %s6 = inlined_call_operand.<no memory space> [shape: f32[1], index: 6, kind: input, shape index: {}]
  %s7 = inlined_call_operand.hbm [shape: f32[2,4,256], index: 7, kind: output, shape index: {}]
  %s8 = sld [smem:[#allocation0]]
  $region61: #{tpu_custom_call.1} parent=0
    _
  %s10 = ssub.s32 1, %s8
  %s11 = scalar_select 0, %s10, %s8
  %12 = sst [smem:[#allocation2]] %s6
  $region1: #{tpu_custom_call.1} parent=0
    #allocation3 [shape = 'u8[8192]{0}', space=vmem, size = 0x2000, scoped, tag = 'output window, operand 0']
    #allocation4 [shape = 's32[2]{0}', space=sflag, size = 0x8, scoped, tag = 'scoped memory for tpu_custom_call.1']
    %13 = vsyncpa [#allocation4], 0
    %s14 = scalar_lea.sflag [#allocation4], 1
    %15 = vsyncpa %s14, 0
    loop: start=0, step=1, limit=4
    $region2: #{tpu_custom_call.1} parent=1 // loop_pre_header
      _
    $region3: #{tpu_custom_call.1} parent=1 // loop_header
      %s17 = sphi 0, %s21
      %p18 = scmp.ge.s32.totalorder %s17, 4
      %s24 = sphi 0, %s36
      %s25 = sphi 0, %s32
      %s26 = sphi 0, %s24
      %s27 = sphi 0, %s25
      %s28 = sphi 0, %s26
      %s29 = sphi 0, %s27
      %s41 = sphi 0, %s43
      %s44 = sphi 0, %s41
      %s45 = sphi 0, %s44
      %s61 = sphi 0, %s45
      %s69 = sphi 0, %s71
      %s72 = sphi 0, %s69
      %s73 = sphi 0, %s72
      %s89 = sphi 0, %s73
      %s93 = sphi 0, %s93
      %s95 = sphi 0, %s93
      %s96 = sphi 0, %s95
      %s110 = sphi 0, %s96
      %s114 = sphi 0, %s114
      %s116 = sphi 0, %s114
      %s117 = sphi 0, %s116
      %s131 = sphi 0, %s117
      %s135 = sphi 0, %s135
      %s137 = sphi 0, %s135
      %s138 = sphi 0, %s137
      %s152 = sphi 0, %s138
      %s156 = sphi 0, %s156
      %s158 = sphi 0, %s156
      %s159 = sphi 0, %s158
      %s173 = sphi 0, %s159
      %s177 = sphi 0, %s177
      %s179 = sphi 0, %s177
      %s180 = sphi 0, %s179
      %s194 = sphi 0, %s180
      %s202 = sphi 0, %s204
      %s205 = sphi 0, %s202
      %s206 = sphi 0, %s205
      %s222 = sphi 0, %s206
    $region4: #{tpu_custom_call.1} parent=1 // loop_header_branch
      %20 = sbr.rel (%p18) target = $region8
    $region5: #{tpu_custom_call.1} parent=1 // loop_body
      %s22 = ssub.s32 %s17, 1
      %s23 = ssub.s32 %s17, 2
      %s30 = sadd.s32 1, %s25
      %p31 = scmp.ge.s32.totalorder %s30, 1
      %s32 = scalar_select %p31, 0, %s30
      %s33 = sadd.s32 1, %s24
      %s34 = scalar_select %p31, %s33, %s24
      %p35 = scmp.ge.s32.totalorder %s34, 2
      %s36 = scalar_select %p35, 0, %s34
      %s37 = ssub.s32 %s24, %s36
      %s38 = ssub.s32 %s25, %s32
      %s39 = sor.u32 %s37, %s38
      %p40 = scmp.eq.s32.totalorder %s39, 0
      %s42 = sadd.s32 %s41, 1
      %s43 = scalar_select %p40, %s41, %s42
      %p46 = pneg %p40
      %p47 = scmp.eq.s32.totalorder %s17, 1
      %p48 = por %p46, %p47
      %p49 = scmp.ne.s32.totalorder %s41, %s44
      %p50 = scmp.eq.s32.totalorder %s17, 0
      %p51 = por %p49, %p50
      %p52 = scmp.ne.s32.totalorder %s41, %s44
      %p53 = scmp.eq.s32.totalorder %s22, 1
      %p54 = por %p52, %p53
      %p55 = scmp.ne.s32.totalorder %s44, %s45
      %p56 = scmp.eq.s32.totalorder %s22, 0
      %p57 = por %p55, %p56
      %p58 = scmp.ne.s32.totalorder %s44, %s45
      %p59 = scmp.eq.s32.totalorder %s23, 1
      %p60 = por %p58, %p59
      %p62 = scmp.ne.s32.totalorder %s45, %s61
      %p63 = scmp.eq.s32.totalorder %s23, 0
      %p64 = por %p62, %p63
      %s65 = ssub.s32 %s24, %s36
      %s66 = ssub.s32 %s25, %s32
      %s67 = sor.u32 %s65, %s66
      %p68 = scmp.eq.s32.totalorder %s67, 0
      %s70 = sadd.s32 %s69, 1
      %s71 = scalar_select %p68, %s69, %s70
      %p74 = pneg %p68
      %p75 = scmp.eq.s32.totalorder %s17, 1
      %p76 = por %p74, %p75
      %p77 = scmp.ne.s32.totalorder %s69, %s72
      %p78 = scmp.eq.s32.totalorder %s17, 0
      %p79 = por %p77, %p78
      %p80 = scmp.ne.s32.totalorder %s69, %s72
      %p81 = scmp.eq.s32.totalorder %s22, 1
      %p82 = por %p80, %p81
      %p83 = scmp.ne.s32.totalorder %s72, %s73
      %p84 = scmp.eq.s32.totalorder %s22, 0
      %p85 = por %p83, %p84
      %p86 = scmp.ne.s32.totalorder %s72, %s73
      %p87 = scmp.eq.s32.totalorder %s23, 1
      %p88 = por %p86, %p87
      %p90 = scmp.ne.s32.totalorder %s73, %s89
      %p91 = scmp.eq.s32.totalorder %s23, 0
      %p92 = por %p90, %p91
      %s94 = sadd.s32 %s93, 1
      %p97 = scmp.eq.s32.totalorder %s17, 1
      %p98 = scmp.ne.s32.totalorder %s93, %s95
      %p99 = scmp.eq.s32.totalorder %s17, 0
      %p100 = por %p98, %p99
      %p101 = scmp.ne.s32.totalorder %s93, %s95
      %p102 = scmp.eq.s32.totalorder %s22, 1
      %p103 = por %p101, %p102
      %p104 = scmp.ne.s32.totalorder %s95, %s96
      %p105 = scmp.eq.s32.totalorder %s22, 0
      %p106 = por %p104, %p105
      %p107 = scmp.ne.s32.totalorder %s95, %s96
      %p108 = scmp.eq.s32.totalorder %s23, 1
      %p109 = por %p107, %p108
      %p111 = scmp.ne.s32.totalorder %s96, %s110
      %p112 = scmp.eq.s32.totalorder %s23, 0
      %p113 = por %p111, %p112
      %s115 = sadd.s32 %s114, 1
      %p118 = scmp.eq.s32.totalorder %s17, 1
      %p119 = scmp.ne.s32.totalorder %s114, %s116
      %p120 = scmp.eq.s32.totalorder %s17, 0
      %p121 = por %p119, %p120
      %p122 = scmp.ne.s32.totalorder %s114, %s116
      %p123 = scmp.eq.s32.totalorder %s22, 1
      %p124 = por %p122, %p123
      %p125 = scmp.ne.s32.totalorder %s116, %s117
      %p126 = scmp.eq.s32.totalorder %s22, 0
      %p127 = por %p125, %p126
      %p128 = scmp.ne.s32.totalorder %s116, %s117
      %p129 = scmp.eq.s32.totalorder %s23, 1
      %p130 = por %p128, %p129
      %p132 = scmp.ne.s32.totalorder %s117, %s131
      %p133 = scmp.eq.s32.totalorder %s23, 0
      %p134 = por %p132, %p133
      %s136 = sadd.s32 %s135, 1
      %p139 = scmp.eq.s32.totalorder %s17, 1
      %p140 = scmp.ne.s32.totalorder %s135, %s137
      %p141 = scmp.eq.s32.totalorder %s17, 0
      %p142 = por %p140, %p141
      %p143 = scmp.ne.s32.totalorder %s135, %s137
      %p144 = scmp.eq.s32.totalorder %s22, 1
      %p145 = por %p143, %p144
      %p146 = scmp.ne.s32.totalorder %s137, %s138
      %p147 = scmp.eq.s32.totalorder %s22, 0
      %p148 = por %p146, %p147
      %p149 = scmp.ne.s32.totalorder %s137, %s138
      %p150 = scmp.eq.s32.totalorder %s23, 1
      %p151 = por %p149, %p150
      %p153 = scmp.ne.s32.totalorder %s138, %s152
      %p154 = scmp.eq.s32.totalorder %s23, 0
      %p155 = por %p153, %p154
      %s157 = sadd.s32 %s156, 1
      %p160 = scmp.eq.s32.totalorder %s17, 1
      %p161 = scmp.ne.s32.totalorder %s156, %s158
      %p162 = scmp.eq.s32.totalorder %s17, 0
      %p163 = por %p161, %p162
      %p164 = scmp.ne.s32.totalorder %s156, %s158
      %p165 = scmp.eq.s32.totalorder %s22, 1
      %p166 = por %p164, %p165
      %p167 = scmp.ne.s32.totalorder %s158, %s159
      %p168 = scmp.eq.s32.totalorder %s22, 0
      %p169 = por %p167, %p168
      %p170 = scmp.ne.s32.totalorder %s158, %s159
      %p171 = scmp.eq.s32.totalorder %s23, 1
      %p172 = por %p170, %p171
      %p174 = scmp.ne.s32.totalorder %s159, %s173
      %p175 = scmp.eq.s32.totalorder %s23, 0
      %p176 = por %p174, %p175
      %s178 = sadd.s32 %s177, 1
      %p181 = scmp.eq.s32.totalorder %s17, 1
      %p182 = scmp.ne.s32.totalorder %s177, %s179
      %p183 = scmp.eq.s32.totalorder %s17, 0
      %p184 = por %p182, %p183
      %p185 = scmp.ne.s32.totalorder %s177, %s179
      %p186 = scmp.eq.s32.totalorder %s22, 1
      %p187 = por %p185, %p186
      %p188 = scmp.ne.s32.totalorder %s179, %s180
      %p189 = scmp.eq.s32.totalorder %s22, 0
      %p190 = por %p188, %p189
      %p191 = scmp.ne.s32.totalorder %s179, %s180
      %p192 = scmp.eq.s32.totalorder %s23, 1
      %p193 = por %p191, %p192
      %p195 = scmp.ne.s32.totalorder %s180, %s194
      %p196 = scmp.eq.s32.totalorder %s23, 0
      %p197 = por %p195, %p196
      %s198 = ssub.s32 %s24, %s36
      %s199 = ssub.s32 %s25, %s32
      %s200 = sor.u32 %s198, %s199
      %p201 = scmp.eq.s32.totalorder %s200, 0
      %s203 = sadd.s32 %s202, 1
      %s204 = scalar_select %p201, %s202, %s203
      %p207 = pneg %p201
      %p208 = scmp.eq.s32.totalorder %s17, 1
      %p209 = por %p207, %p208
      %p210 = scmp.ne.s32.totalorder %s202, %s205
      %p211 = scmp.eq.s32.totalorder %s17, 0
      %p212 = por %p210, %p211
      %p213 = scmp.ne.s32.totalorder %s202, %s205
      %p214 = scmp.eq.s32.totalorder %s22, 1
      %p215 = por %p213, %p214
      %p216 = scmp.ne.s32.totalorder %s205, %s206
      %p217 = scmp.eq.s32.totalorder %s22, 0
      %p218 = por %p216, %p217
      %p219 = scmp.ne.s32.totalorder %s205, %s206
      %p220 = scmp.eq.s32.totalorder %s23, 1
      %p221 = por %p219, %p220
      %p223 = scmp.ne.s32.totalorder %s206, %s222
      %p224 = scmp.eq.s32.totalorder %s23, 0
      %p225 = por %p223, %p224
      %p226 = scmp.le.s32.totalorder 1, %s17
      %p227 = scmp.lt.s32.totalorder %s17, 3
      %p228 = pnand %p226, %p227
      %p229 = pneg %p228
      // Predicated region
      $region9: #{tpu_custom_call.1} parent=5 // pred_check
        _
      $region10: #{tpu_custom_call.1} parent=5 // pred_check_branch
        %231 = sbr.rel (%p228) target = $region12
      $region11: #{tpu_custom_call.1} parent=5 // pred_region
        %s232 = ssub.s32 %s17, 1
        // Predicated region
        $region13: #{tpu_custom_call.1} parent=11 // pred_check
          %p233 = pneg %p106
        $region14: #{tpu_custom_call.1} parent=11 // pred_check_branch
          %235 = sbr.rel (%p233) target = $region16
        $region15: #{tpu_custom_call.1} parent=11 // pred_region
          _
        $region16: #{tpu_custom_call.1} parent=11 // pred_fallthru
          _
        // Predicated region
        $region17: #{tpu_custom_call.1} parent=11 // pred_check
          %p236 = pneg %p127
        $region18: #{tpu_custom_call.1} parent=11 // pred_check_branch
          %238 = sbr.rel (%p236) target = $region20
        $region19: #{tpu_custom_call.1} parent=11 // pred_region
          _
        $region20: #{tpu_custom_call.1} parent=11 // pred_fallthru
          _
        // Predicated region
        $region21: #{tpu_custom_call.1} parent=11 // pred_check
          %p239 = pneg %p148
        $region22: #{tpu_custom_call.1} parent=11 // pred_check_branch
          %241 = sbr.rel (%p239) target = $region24
        $region23: #{tpu_custom_call.1} parent=11 // pred_region
          _
        $region24: #{tpu_custom_call.1} parent=11 // pred_fallthru
          _
        // Predicated region
        $region25: #{tpu_custom_call.1} parent=11 // pred_check
          %p242 = pneg %p169
        $region26: #{tpu_custom_call.1} parent=11 // pred_check_branch
          %244 = sbr.rel (%p242) target = $region28
        $region27: #{tpu_custom_call.1} parent=11 // pred_region
          _
        $region28: #{tpu_custom_call.1} parent=11 // pred_fallthru
          _
        // Predicated region
        $region29: #{tpu_custom_call.1} parent=11 // pred_check
          %p245 = pneg %p190
        $region30: #{tpu_custom_call.1} parent=11 // pred_check_branch
          %247 = sbr.rel (%p245) target = $region32
        $region31: #{tpu_custom_call.1} parent=11 // pred_region
          _
        $region32: #{tpu_custom_call.1} parent=11 // pred_fallthru
          _
      $region12: #{tpu_custom_call.1} parent=5 // pred_fallthru
        _
      %p248 = scmp.lt.s32.totalorder %s17, 2
      // Predicated region
      $region33: #{tpu_custom_call.1} parent=5 // pred_check
        %p249 = pneg %p248
      $region34: #{tpu_custom_call.1} parent=5 // pred_check_branch
        %251 = sbr.rel (%p249) target = $region36
      $region35: #{tpu_custom_call.1} parent=5 // pred_region
        // Predicated region
        $region37: #{tpu_custom_call.1} parent=35 // pred_check
          %p252 = pneg %p51
        $region38: #{tpu_custom_call.1} parent=35 // pred_check_branch
          %254 = sbr.rel (%p252) target = $region40
        $region39: #{tpu_custom_call.1} parent=35 // pred_region
          %s255 = smul.u32 2, %s25
          %p256 = scmp.lt.s32.totalorder %s24, 1
          %s257 = scalar_select %p256, %s24, 1
          %p258 = scmp.lt.s32.totalorder %s255, 1
          %s259 = scalar_select %p258, %s255, 1
          %s260 = smul.addr %s257, 2
          %s261 = sadd.s32 %s259, %s260
          %s262 = smul.addr %s261, 4
          %s263 = scalar_lea.vmem %s0, %s262
          %s264 = smul.u32 2, %s25
        $region40: #{tpu_custom_call.1} parent=35 // pred_fallthru
          _
        // Predicated region
        $region41: #{tpu_custom_call.1} parent=35 // pred_check
          %p265 = pneg %p79
        $region42: #{tpu_custom_call.1} parent=35 // pred_check_branch
          %267 = sbr.rel (%p265) target = $region44
        $region43: #{tpu_custom_call.1} parent=35 // pred_region
          %s268 = smul.u32 2, %s25
          %p269 = scmp.lt.s32.totalorder %s24, 1
          %s270 = scalar_select %p269, %s24, 1
          %p271 = scmp.lt.s32.totalorder %s268, 1
          %s272 = scalar_select %p271, %s268, 1
          %s273 = smul.addr %s270, 2
          %s274 = sadd.s32 %s272, %s273
          %s275 = smul.addr %s274, 4
          %s276 = scalar_lea.vmem %s1, %s275
          %s277 = smul.u32 2, %s25
        $region44: #{tpu_custom_call.1} parent=35 // pred_fallthru
          _
      $region36: #{tpu_custom_call.1} parent=5 // pred_fallthru
        _
      %p278 = scmp.le.s32.totalorder 1, %s17
      %p279 = scmp.lt.s32.totalorder %s17, 3
      %p280 = pnand %p278, %p279
      %p281 = pneg %p280
      // Predicated region
      $region45: #{tpu_custom_call.1} parent=5 // pred_check
        _
      $region46: #{tpu_custom_call.1} parent=5 // pred_check_branch
        %283 = sbr.rel (%p280) target = $region48
      $region47: #{tpu_custom_call.1} parent=5 // pred_region
        %s284 = ssub.s32 %s17, 1
        %s285 = smul.u32 2, %s27
        %p286 = scmp.lt.s32.totalorder %s26, 1
        %s287 = scalar_select %p286, %s26, 1
        %p288 = scmp.lt.s32.totalorder %s285, 1
        %s289 = scalar_select %p288, %s285, 1
        %s290 = smul.addr %s287, 2
        %s291 = sadd.s32 %s289, %s290
        %s292 = smul.addr %s291, 4
        %s293 = scalar_lea.vmem %s0, %s292
        %p294 = pneg %p57
        %p295 = pneg %p54
        %s296 = smul.u32 2, %s27
        %p297 = scmp.lt.s32.totalorder %s26, 1
        %s298 = scalar_select %p297, %s26, 1
        %p299 = scmp.lt.s32.totalorder %s296, 1
        %s300 = scalar_select %p299, %s296, 1
        %s301 = smul.addr %s298, 2
        %s302 = sadd.s32 %s300, %s301
        %s303 = smul.addr %s302, 4
        %s304 = scalar_lea.vmem %s1, %s303
        %p305 = pneg %p85
        %p306 = pneg %p82
        %p307 = pneg %p106
        %p308 = pneg %p103
        %p309 = pneg %p127
        %p310 = pneg %p124
        %p311 = pneg %p148
        %p312 = pneg %p145
        %p313 = pneg %p169
        %p314 = pneg %p166
        %p315 = pneg %p190
        %p316 = pneg %p187
        %p317 = pneg %p218
        %p318 = pneg %p215
        %s319 = sand.u32 %s205, 1
        %s320 = scalar_lea.sflag [#allocation4], %s319
        %s321 = sand.u32 %s205, 1
        %s322 = smul.addr %s321, 8
        %s323 = scalar_lea.vmem [#allocation3], %s322
        %s324 = smul.u32 2, %s27
        %p325 = scmp.lt.s32.totalorder %s26, 1
        %s326 = scalar_select %p325, %s26, 1
        %p327 = scmp.lt.s32.totalorder %s324, 1
        %s328 = scalar_select %p327, %s324, 1
        %s329 = smul.addr %s326, 2
        %s330 = sadd.s32 %s328, %s329
        %s331 = smul.addr %s330, 4
        %s332 = scalar_lea.vmem %s0, %s331
        %s333 = smul.u32 2, %s27
        %s334 = smul.u32 2, %s27
        %p335 = scmp.lt.s32.totalorder %s26, 1
        %s336 = scalar_select %p335, %s26, 1
        %p337 = scmp.lt.s32.totalorder %s334, 1
        %s338 = scalar_select %p337, %s334, 1
        %s339 = smul.addr %s336, 2
        %s340 = sadd.s32 %s338, %s339
        %s341 = smul.addr %s340, 4
        %s342 = scalar_lea.vmem %s1, %s341
        %s343 = smul.u32 2, %s27
        %s344 = smul.u32 2, %s27
        %v345 = vld [vmem:[%s332] sm:$0xff]
        %v346 = vld [vmem:[%s342] sm:$0xff]
        %v347 = vld [vmem:[%s2] sm:$0xff]
        %v348 = vld [vmem:[%s2 + $0x8] sm:$0xff]
        %v349 = vld [vmem:[%s2 + $0x10] sm:$0xff]
        %v350 = vld [vmem:[%s2 + $0x18] sm:$0xff]
        %v351 = vld [vmem:[%s3] sm:$0xff]
        %v352 = vld [vmem:[%s3 + $0x8] sm:$0xff]
        %v353 = vld [vmem:[%s3 + $0x10] sm:$0xff]
        %v354 = vld [vmem:[%s3 + $0x18] sm:$0xff]
        %v356 = vcombine.high %v346, %v346
        %vm357 = vcmask 31744
        %v359 = vsel %vm357, %v351, 0
        %v362 = vsel %vm357, %v352, 0
        %v365 = vsel %vm357, %v353, 0
        %v368 = vsel %vm357, %v354, 0
        %vm370 = vcmask 1043456
        %v371 = vsel %vm370, %v346, 0
        %v373 = vsel %vm370, %v356, 0
        %375 = vmatprep.subr.mxu0 %v373
        %376 = vmatpush1.msra.mxu0 %v371
        %377 = vmatprep.subr.mxu0 0.0
        %378 = vmatpush1.msra.mxu0 0.0
        %379 = vmatprep.subr.mxu0 0.0
        %380 = vmatpush1.msra.mxu0 0.0
        %381 = vmatprep.subr.mxu0 0.0
        %382 = vmatpush1.msra.mxu0 0.0
        %383 = vmatprep.subr.mxu0 0.0
        %384 = vmatpush1.msra.mxu0 0.0
        %385 = vmatprep.subr.mxu0 0.0
        %386 = vmatpush1.msra.mxu0 0.0
        %387 = vmatprep.subr.mxu0 0.0
        %388 = vmatpush1.msra.mxu0 0.0
        %389 = vmatprep.subr.mxu0 0.0
        %390 = vmatpush1.msra.mxu0 0.0
        %391 = vmatprep.subr.mxu0 0.0
        %392 = vmatpush1.msra.mxu0 0.0
        %393 = vmatprep.subr.mxu0 0.0
        %394 = vmatpush1.msra.mxu0 0.0
        %395 = vmatprep.subr.mxu0 0.0
        %396 = vmatpush1.msra.mxu0 0.0
        %397 = vmatprep.subr.mxu0 0.0
        %398 = vmatpush1.msra.mxu0 0.0
        %399 = vmatprep.subr.mxu0 0.0
        %400 = vmatpush1.msra.mxu0 0.0
        %401 = vmatprep.subr.mxu0 0.0
        %402 = vmatpush1.msra.mxu0 0.0
        %403 = vmatprep.subr.mxu0 0.0
        %404 = vmatpush1.msra.mxu0 0.0
        %405 = vmatprep.subr.mxu0 0.0
        %406 = vmatpush1.msra.mxu0 0.0
        %407 = vmatprep.subr.mxu0 0.0
        %408 = vmatpush1.msra.mxu0 0.0
        %409 = vmatprep.subr.mxu0 0.0
        %410 = vmatpush1.msra.mxu0 0.0
        %411 = vmatprep.subr.mxu0 0.0
        %412 = vmatpush1.msra.mxu0 0.0
        %413 = vmatprep.subr.mxu0 0.0
        %414 = vmatpush1.msra.mxu0 0.0
        %415 = vmatprep.subr.mxu0 0.0
        %416 = vmatpush1.msra.mxu0 0.0
        %417 = vmatprep.subr.mxu0 0.0
        %418 = vmatpush1.msra.mxu0 0.0
        %419 = vmatprep.subr.mxu0 0.0
        %420 = vmatpush1.msra.mxu0 0.0
        %421 = vmatprep.subr.mxu0 0.0
        %422 = vmatpush1.msra.mxu0 0.0
        %423 = vmatprep.subr.mxu0 0.0
        %424 = vmatpush1.msra.mxu0 0.0
        %425 = vmatprep.subr.mxu0 0.0
        %426 = vmatpush1.msra.mxu0 0.0
        %427 = vmatprep.subr.mxu0 0.0
        %428 = vmatpush1.msra.mxu0 0.0
        %429 = vmatprep.subr.mxu0 0.0
        %430 = vmatpush1.msra.mxu0 0.0
        %431 = vmatprep.subr.mxu0 0.0
        %432 = vmatpush1.msra.mxu0 0.0
        %433 = vmatprep.subr.mxu0 0.0
        %434 = vmatpush1.msra.mxu0 0.0
        %435 = vmatprep.subr.mxu0 0.0
        %436 = vmatpush1.msra.mxu0 0.0
        %437 = vmatprep.subr.mxu0 0.0
        %438 = vmatpush1.msra.mxu0 0.0
        %439 = vmatprep.mubr.f32.mxu0 0.0
        %440 = vmatmul.mubr.f32.gmra.mrb[0].mxu0 %v359
        %v441 = vpop.f32.mrb[0].mxu0
        %v442 = vadd.f32 0.0, %v441
        %v443 = vpop.f32.mrb[0].mxu0
        %v444 = vadd.f32 0.0, %v443
        %445 = vmatprep.mubr.f32.mxu0 0.0
        %446 = vmatmul.mubr.f32.gmra.mrb[0].mxu0 %v362
        %v447 = vpop.f32.mrb[0].mxu0
        %v448 = vadd.f32 0.0, %v447
        %v449 = vpop.f32.mrb[0].mxu0
        %v450 = vadd.f32 0.0, %v449
        %451 = vmatprep.mubr.f32.mxu0 0.0
        %452 = vmatmul.mubr.f32.gmra.mrb[0].mxu0 %v365
        %v453 = vpop.f32.mrb[0].mxu0
        %v454 = vadd.f32 0.0, %v453
        %v455 = vpop.f32.mrb[0].mxu0
        %v456 = vadd.f32 0.0, %v455
        %457 = vmatprep.mubr.f32.mxu0 0.0
        %458 = vmatmul.mubr.f32.gmra.mrb[0].mxu0 %v368
        %v459 = vpop.f32.mrb[0].mxu0
        %v460 = vadd.f32 0.0, %v459
        %v461 = vpop.f32.mrb[0].mxu0
        %v462 = vadd.f32 0.0, %v461
        %463 = vdwg.mxu0
        %v465 = vcombine.high %v345, %v345
        %v467 = vsel %vm357, %v347, 0
        %v470 = vsel %vm357, %v348, 0
        %v473 = vsel %vm357, %v349, 0
        %v476 = vsel %vm357, %v350, 0
        %v478 = vsel %vm370, %v345, 0
        %v480 = vsel %vm370, %v465, 0
        %482 = vmatprep.subr.mxu0 %v480
        %483 = vmatpush1.msra.mxu0 %v478
        %484 = vmatprep.subr.mxu0 0.0
        %485 = vmatpush1.msra.mxu0 0.0
        %486 = vmatprep.subr.mxu0 0.0
        %487 = vmatpush1.msra.mxu0 0.0
        %488 = vmatprep.subr.mxu0 0.0
        %489 = vmatpush1.msra.mxu0 0.0
        %490 = vmatprep.subr.mxu0 0.0
        %491 = vmatpush1.msra.mxu0 0.0
        %492 = vmatprep.subr.mxu0 0.0
        %493 = vmatpush1.msra.mxu0 0.0
        %494 = vmatprep.subr.mxu0 0.0
        %495 = vmatpush1.msra.mxu0 0.0
        %496 = vmatprep.subr.mxu0 0.0
        %497 = vmatpush1.msra.mxu0 0.0
        %498 = vmatprep.subr.mxu0 0.0
        %499 = vmatpush1.msra.mxu0 0.0
        %500 = vmatprep.subr.mxu0 0.0
        %501 = vmatpush1.msra.mxu0 0.0
        %502 = vmatprep.subr.mxu0 0.0
        %503 = vmatpush1.msra.mxu0 0.0
        %504 = vmatprep.subr.mxu0 0.0
        %505 = vmatpush1.msra.mxu0 0.0
        %506 = vmatprep.subr.mxu0 0.0
        %507 = vmatpush1.msra.mxu0 0.0
        %508 = vmatprep.subr.mxu0 0.0
        %509 = vmatpush1.msra.mxu0 0.0
        %510 = vmatprep.subr.mxu0 0.0
        %511 = vmatpush1.msra.mxu0 0.0
        %512 = vmatprep.subr.mxu0 0.0
        %513 = vmatpush1.msra.mxu0 0.0
        %514 = vmatprep.subr.mxu0 0.0
        %515 = vmatpush1.msra.mxu0 0.0
        %516 = vmatprep.subr.mxu0 0.0
        %517 = vmatpush1.msra.mxu0 0.0
        %518 = vmatprep.subr.mxu0 0.0
        %519 = vmatpush1.msra.mxu0 0.0
        %520 = vmatprep.subr.mxu0 0.0
        %521 = vmatpush1.msra.mxu0 0.0
        %522 = vmatprep.subr.mxu0 0.0
        %523 = vmatpush1.msra.mxu0 0.0
        %524 = vmatprep.subr.mxu0 0.0
        %525 = vmatpush1.msra.mxu0 0.0
        %526 = vmatprep.subr.mxu0 0.0
        %527 = vmatpush1.msra.mxu0 0.0
        %528 = vmatprep.subr.mxu0 0.0
        %529 = vmatpush1.msra.mxu0 0.0
        %530 = vmatprep.subr.mxu0 0.0
        %531 = vmatpush1.msra.mxu0 0.0
        %532 = vmatprep.subr.mxu0 0.0
        %533 = vmatpush1.msra.mxu0 0.0
        %534 = vmatprep.subr.mxu0 0.0
        %535 = vmatpush1.msra.mxu0 0.0
        %536 = vmatprep.subr.mxu0 0.0
        %537 = vmatpush1.msra.mxu0 0.0
        %538 = vmatprep.subr.mxu0 0.0
        %539 = vmatpush1.msra.mxu0 0.0
        %540 = vmatprep.subr.mxu0 0.0
        %541 = vmatpush1.msra.mxu0 0.0
        %542 = vmatprep.subr.mxu0 0.0
        %543 = vmatpush1.msra.mxu0 0.0
        %544 = vmatprep.subr.mxu0 0.0
        %545 = vmatpush1.msra.mxu0 0.0
        %546 = vmatprep.mubr.f32.mxu0 0.0
        %547 = vmatmul.mubr.f32.gmra.mrb[0].mxu0 %v467
        %v548 = vpop.f32.mrb[0].mxu0
        %v549 = vadd.f32 %v442, %v548
        %v550 = vpop.f32.mrb[0].mxu0
        %v551 = vadd.f32 %v444, %v550
        %552 = vmatprep.mubr.f32.mxu0 0.0
        %553 = vmatmul.mubr.f32.gmra.mrb[0].mxu0 %v470
        %v554 = vpop.f32.mrb[0].mxu0
        %v555 = vadd.f32 %v448, %v554
        %v556 = vpop.f32.mrb[0].mxu0
        %v557 = vadd.f32 %v450, %v556
        %558 = vmatprep.mubr.f32.mxu0 0.0
        %559 = vmatmul.mubr.f32.gmra.mrb[0].mxu0 %v473
        %v560 = vpop.f32.mrb[0].mxu0
        %v561 = vadd.f32 %v454, %v560
        %v562 = vpop.f32.mrb[0].mxu0
        %v563 = vadd.f32 %v456, %v562
        %564 = vmatprep.mubr.f32.mxu0 0.0
        %565 = vmatmul.mubr.f32.gmra.mrb[0].mxu0 %v476
        %v566 = vpop.f32.mrb[0].mxu0
        %v567 = vadd.f32 %v460, %v566
        %v568 = vpop.f32.mrb[0].mxu0
        %v569 = vadd.f32 %v462, %v568
        %570 = vdwg.mxu0
        %v571 = vld [vmem:[%s4] sm:$0xff]
        %v572 = vld [vmem:[%s4 + $0x8] sm:$0xff]
        %v573 = vld [vmem:[%s4 + $0x10] sm:$0xff]
        %v574 = vld [vmem:[%s4 + $0x18] sm:$0xff]
        %576 = vset.pattern.permute.xlu0 0
        %577 = vperm.xlu0 %576, %v571
        %v578 = vpop.permute.xlu0 %577
        %581 = vset.pattern.permute.xlu0 0
        %582 = vperm.xlu0 %581, %v572
        %v583 = vpop.permute.xlu0 %582
        %586 = vset.pattern.permute.xlu0 0
        %587 = vperm.xlu0 %586, %v573
        %v588 = vpop.permute.xlu0 %587
        %591 = vset.pattern.permute.xlu0 0
        %592 = vperm.xlu0 %591, %v574
        %v593 = vpop.permute.xlu0 %592
        %v595 = vadd.f32 %v549, %v578
        %v596 = vadd.f32 %v551, %v578
        %v597 = vadd.f32 %v555, %v583
        %v598 = vadd.f32 %v557, %v583
        %v599 = vadd.f32 %v561, %v588
        %v600 = vadd.f32 %v563, %v588
        %v601 = vadd.f32 %v567, %v593
        %v602 = vadd.f32 %v569, %v593
        %v603 = vmax.f32 %v595, 0.0
        %v604 = vmax.f32 %v596, 0.0
        %v605 = vmax.f32 %v597, 0.0
        %v606 = vmax.f32 %v598, 0.0
        %v607 = vmax.f32 %v599, 0.0
        %v608 = vmax.f32 %v600, 0.0
        %v609 = vmax.f32 %v601, 0.0
        %v610 = vmax.f32 %v602, 0.0
        %v611 = vld [vmem:[%s5] sm:$0x1]
        %s612 = sld [smem:[#allocation2]]
        %v613 = vstv %s612
        %vm614 = vcmask 261120
        %v616 = vsel %vm614, %v611, 0
        %618 = vmatprep.subr.mxu0 %v604
        %619 = vmatpush1.msra.mxu0 %v603
        %620 = vmatprep.subr.mxu0 %v606
        %621 = vmatpush1.msra.mxu0 %v605
        %622 = vmatprep.subr.mxu0 %v608
        %623 = vmatpush1.msra.mxu0 %v607
        %624 = vmatprep.subr.mxu0 %v610
        %625 = vmatpush1.msra.mxu0 %v609
        %626 = vmatprep.subr.mxu0 0.0
        %627 = vmatpush1.msra.mxu0 0.0
        %628 = vmatprep.subr.mxu0 0.0
        %629 = vmatpush1.msra.mxu0 0.0
        %630 = vmatprep.subr.mxu0 0.0
        %631 = vmatpush1.msra.mxu0 0.0
        %632 = vmatprep.subr.mxu0 0.0
        %633 = vmatpush1.msra.mxu0 0.0
        %634 = vmatprep.subr.mxu0 0.0
        %635 = vmatpush1.msra.mxu0 0.0
        %636 = vmatprep.subr.mxu0 0.0
        %637 = vmatpush1.msra.mxu0 0.0
        %638 = vmatprep.subr.mxu0 0.0
        %639 = vmatpush1.msra.mxu0 0.0
        %640 = vmatprep.subr.mxu0 0.0
        %641 = vmatpush1.msra.mxu0 0.0
        %642 = vmatprep.subr.mxu0 0.0
        %643 = vmatpush1.msra.mxu0 0.0
        %644 = vmatprep.subr.mxu0 0.0
        %645 = vmatpush1.msra.mxu0 0.0
        %646 = vmatprep.subr.mxu0 0.0
        %647 = vmatpush1.msra.mxu0 0.0
        %648 = vmatprep.subr.mxu0 0.0
        %649 = vmatpush1.msra.mxu0 0.0
        %650 = vmatprep.subr.mxu0 0.0
        %651 = vmatpush1.msra.mxu0 0.0
        %652 = vmatprep.subr.mxu0 0.0
        %653 = vmatpush1.msra.mxu0 0.0
        %654 = vmatprep.subr.mxu0 0.0
        %655 = vmatpush1.msra.mxu0 0.0
        %656 = vmatprep.subr.mxu0 0.0
        %657 = vmatpush1.msra.mxu0 0.0
        %658 = vmatprep.subr.mxu0 0.0
        %659 = vmatpush1.msra.mxu0 0.0
        %660 = vmatprep.subr.mxu0 0.0
        %661 = vmatpush1.msra.mxu0 0.0
        %662 = vmatprep.subr.mxu0 0.0
        %663 = vmatpush1.msra.mxu0 0.0
        %664 = vmatprep.subr.mxu0 0.0
        %665 = vmatpush1.msra.mxu0 0.0
        %666 = vmatprep.subr.mxu0 0.0
        %667 = vmatpush1.msra.mxu0 0.0
        %668 = vmatprep.subr.mxu0 0.0
        %669 = vmatpush1.msra.mxu0 0.0
        %670 = vmatprep.subr.mxu0 0.0
        %671 = vmatpush1.msra.mxu0 0.0
        %672 = vmatprep.subr.mxu0 0.0
        %673 = vmatpush1.msra.mxu0 0.0
        %674 = vmatprep.subr.mxu0 0.0
        %675 = vmatpush1.msra.mxu0 0.0
        %676 = vmatprep.subr.mxu0 0.0
        %677 = vmatpush1.msra.mxu0 0.0
        %678 = vmatprep.subr.mxu0 0.0
        %679 = vmatpush1.msra.mxu0 0.0
        %680 = vmatprep.subr.mxu0 0.0
        %681 = vmatpush1.msra.mxu0 0.0
        %682 = vmatprep.mubr.f32.mxu0 0.0
        %683 = vmatmul.mubr.f32.gmra.mrb[0].mxu0 %v616
        %v684 = vpop.f32.mrb[0].mxu0
        %v685 = vadd.f32 %v613, %v684
        %v686 = vpop.f32.mrb[0].mxu0
        %v687 = vadd.f32 %v613, %v686
        %688 = vdwg.mxu0
        %v689 = vxor.u32 %v685, 2147483648
        %v690 = vxor.u32 %v687, 2147483648
        %v691 = vmul.f32 %v689, 1.442695
        %v692 = vpow.pop %v691
        %v693 = vmul.f32 %v690, 1.442695
        %v694 = vpow.pop %v693
        %v695 = vadd.f32 %v692, 1.0
        %v696 = vadd.f32 %v694, 1.0
        %v697 = vrcp.pop %v695
        %v698 = vmul.f32 1.0, %v697
        %v699 = vrcp.pop %v696
        %v700 = vmul.f32 1.0, %v699
        %v701 = vlaneseq
        %v702 = vshrl.u32 %v701, 7
        %v703 = vsub.s32 0, %v702
        %v704 = vrot.slane %v698, %v703
        %v705 = vlaneseq
        %v706 = vshrl.u32 %v705, 7
        %v707 = vsub.s32 0, %v706
        %v708 = vrot.slane %v700, %v707
        %v711 = vcombine.low %v704, %v708
        %v713 = vmul.f32 %v346, %v711
        %714 = vst [vmem:[%s323] sm:$0xff] %v713
        %s715 = sand.u32 %s205, 1
        %s716 = scalar_lea.sflag [#allocation4], %s715
        %s717 = sand.u32 %s205, 1
        %s718 = smul.addr %s717, 8
        %s719 = scalar_lea.vmem [#allocation3], %s718
        // Predicated region
        $region49: #{tpu_custom_call.1} parent=47 // pred_check
          %p720 = pneg %p215
        $region50: #{tpu_custom_call.1} parent=47 // pred_check_branch
          %722 = sbr.rel (%p720) target = $region52
        $region51: #{tpu_custom_call.1} parent=47 // pred_region
          %s723 = smul.u32 2, %s27
          %s725 = ssub.s32 128, 128
          %726 = vsyncadd %s716, %s725
          %s727 = smul.addr %s26, 2
          %s728 = sadd.s32 %s723, %s727
          %s729 = smul.addr %s728, 64
          %s730 = scalar_lea.hbm %s7, %s729
          %s732 = sshll.u32 %s719, 4
          %s733 = int_to_ptr.vmem [resolvable:$true] %s732
          %735 = dma.vmem_to_hbm [thread:$0]  %s733, 128, %s730, %s716
        $region52: #{tpu_custom_call.1} parent=47 // pred_fallthru
          _
      $region48: #{tpu_custom_call.1} parent=5 // pred_fallthru
        _
      %p736 = scmp.le.s32.totalorder 2, %s17
      // Predicated region
      $region53: #{tpu_custom_call.1} parent=5 // pred_check
        %p737 = pneg %p736
      $region54: #{tpu_custom_call.1} parent=5 // pred_check_branch
        %739 = sbr.rel (%p737) target = $region56
      $region55: #{tpu_custom_call.1} parent=5 // pred_region
        %s740 = ssub.s32 %s17, 2
        // Predicated region
        $region57: #{tpu_custom_call.1} parent=55 // pred_check
          %p741 = pneg %p221
        $region58: #{tpu_custom_call.1} parent=55 // pred_check_branch
          %743 = sbr.rel (%p741) target = $region60
        $region59: #{tpu_custom_call.1} parent=55 // pred_region
          %s744 = sand.u32 %s206, 1
          %s745 = scalar_lea.sflag [#allocation4], %s744
          %s746 = sand.u32 %s206, 1
          %s747 = smul.addr %s746, 8
          %s748 = scalar_lea.vmem [#allocation3], %s747
          %749 = dma.done %s745, 128
        $region60: #{tpu_custom_call.1} parent=55 // pred_fallthru
          _
      $region56: #{tpu_custom_call.1} parent=5 // pred_fallthru
        _
    $region6: #{tpu_custom_call.1} parent=1 // loop_footer
      %s21 = sadd.s32 1, %s17
    $region7: #{tpu_custom_call.1} parent=1 // loop_footer_branch
      %16 = sbr.rel target = $region3
    $region8: #{tpu_custom_call.1} parent=1 // loop_exit
      _
    %750 = vsyncpa [#allocation4], 1
    %s751 = scalar_lea.sflag [#allocation4], 1
    %752 = vsyncpa %s751, 1

</llo_original>
